<compile_context>
chip_gen: v5e
topology: v5e:2x2
jax: 0.10.0
libtpu: 0.0.40
codegen_flags: <defaults>
</compile_context>

<pallas_src>
import functools

import jax
import jax.numpy as jnp
from jax import lax
from jax.experimental import pallas as pl
from jax.experimental.pallas import tpu as pltpu


def _ce_kernel(logits_ref, tgt_ref, msk_ref, out_ref,
               m_ref, s_ref, t_ref, *, n_rows, vocab):
    """Online (max, sum-exp, target-logit) over vocab chunks; finalize last."""
    i = pl.program_id(0)                 # row-tile index   ("parallel")
    k = pl.program_id(1)                 # vocab-chunk index ("arbitrary")
    nk = pl.num_programs(1)
    tm, tvk = logits_ref.shape

    @pl.when(k == 0)
    def _():
        m_ref[...] = jnp.full_like(m_ref, -jnp.inf)
        s_ref[...] = jnp.zeros_like(s_ref)
        t_ref[...] = jnp.zeros_like(t_ref)

    chunk = logits_ref[...]              # (tm, tvk) native dtype (no f32 copy)
    tgt = tgt_ref[...]                   # (tm, 1) int32

    # Global vocab column of each lane in this chunk.  The last vocab block
    # may hang past V (OOB block read -> arbitrary/NaN data), so every use is
    # gated with `where`, never with a multiply.
    col = k * tvk + lax.broadcasted_iota(jnp.int32, (1, tvk), 1)   # (1, tvk)
    in_vocab = col < vocab                                         # (1, tvk)

    # Running row max; max is exact in the native dtype, then cast to f32.
    neg_inf = jnp.array(-jnp.inf, dtype=chunk.dtype)
    chunk_max = jnp.max(jnp.where(in_vocab, chunk, neg_inf),
                        axis=-1, keepdims=True).astype(jnp.float32)
    m_prev = m_ref[...]
    m_new = jnp.maximum(m_prev, chunk_max)

    # Online sum-exp; the f32 cast is folded into the exp expression.
    e = jnp.where(in_vocab,
                  jnp.exp(chunk.astype(jnp.float32) - m_new),
                  0.0)
    s_ref[...] = s_ref[...] * jnp.exp(m_prev - m_new) + jnp.sum(
        e, axis=-1, keepdims=True)
    m_ref[...] = m_new

    # Target-logit gather via the (1, tvk) lane iota broadcast against the
    # (tm, 1) targets (no (tm, V) one-hot / iota materialised).
    # NOTE: out-of-range targets (e.g. ignore_index=-100) contribute 0 and
    # MUST be masked out by `mask`, matching the reference module's usage.
    hit = col == tgt                                               # (tm, tvk)
    t_ref[...] += jnp.sum(jnp.where(hit, chunk, jnp.zeros_like(chunk)),
                          axis=-1, keepdims=True).astype(jnp.float32)

    @pl.when(k == nk - 1)
    def _():
        lse = m_ref[...] + jnp.log(s_ref[...])                     # (tm, 1)
        # Valid rows = user mask AND inside the true row range (the last row
        # tile may hang over the end of the array).
        row = i * tm + lax.broadcasted_iota(jnp.int32, (tm, 1), 0)
        valid = (row < n_rows) & (msk_ref[...] != 0)
        contrib = jnp.where(valid, lse - t_ref[...], 0.0)
        loss_sum = jnp.sum(contrib)
        cnt_sum = jnp.sum(valid.astype(jnp.float32))
        # Pack (loss, count) into a single lane-dense block:
        #   lane 0 = loss partial, lanes 1.. = count partial.
        lane = lax.broadcasted_iota(jnp.int32, (1, 1, 128), 2)
        out_ref[...] = jnp.broadcast_to(
            jnp.where(lane == 0, loss_sum, cnt_sum), out_ref.shape)


def _vmem_capacity_bytes():
    try:
        info = pltpu.get_tpu_info()
        cap = getattr(info, "vmem_capacity_bytes", None)
        if cap:
            return int(cap)
    except Exception:
        pass
    return 128 * 1024 * 1024


def _choose_tiles(n_rows, vocab, itemsize):
    """(tm, tvk): row tile and vocab-chunk tile, sized per TPU generation."""
    small_vmem = _vmem_capacity_bytes() <= 64 * 1024 * 1024   # v7x: 64 MiB/TC
    # Native-dtype logits bytes per tile; on top of this come 2x for
    # double-buffering plus a few f32-tile-sized elementwise temporaries.
    native_budget = (2 if small_vmem else 3) * 1024 * 1024

    # Vocab (lane) tile: full vocab when small, otherwise 2048-lane chunks
    # reduced online so VMEM is capped independently of V.
    tvk = vocab if vocab <= 2048 else 2048

    tm = native_budget // (tvk * itemsize)
    tm = max(8, min(1024, (tm // 8) * 8))

    if n_rows < 16:
        return n_rows, tvk               # single full-dim row block
    # Keep >= 2 row blocks so v7x's two TensorCores both get work.
    half = (((n_rows + 1) // 2) + 7) // 8 * 8
    tm = min(tm, half)
    return tm, tvk


def masked_cross_entropy(outputs, targets, mask, *, tm=None, tvk=None):
    """outputs: (B, T, V) logits; targets: (B, T) ints; mask: (B, T) bool."""
    vocab = outputs.shape[-1]
    logits = outputs.reshape(-1, vocab)          # native dtype, no pad/upcast
    n = logits.shape[0]
    tgt = targets.reshape(-1, 1).astype(jnp.int32)
    msk = mask.reshape(-1, 1).astype(jnp.int32)

    auto_tm, auto_tvk = _choose_tiles(n, vocab, logits.dtype.itemsize)
    tm = auto_tm if tm is None else tm
    tvk = auto_tvk if tvk is None else tvk
    nb = pl.cdiv(n, tm)
    nvk = pl.cdiv(vocab, tvk)

    small_vmem = _vmem_capacity_bytes() <= 64 * 1024 * 1024
    vmem_limit = (40 if small_vmem else 64) * 1024 * 1024

    kernel = functools.partial(_ce_kernel, n_rows=n, vocab=vocab)

    cost = pl.CostEstimate(
        flops=int(5 * n * vocab),
        transcendentals=int(n * vocab),
        bytes_accessed=int(n * vocab * logits.dtype.itemsize + 8 * n
                           + 4096 * nb),
    )

    parts = pl.pallas_call(
        kernel,
        out_shape=jax.ShapeDtypeStruct((nb, 8, 128), jnp.float32),
        grid_spec=pltpu.PrefetchScalarGridSpec(
            num_scalar_prefetch=0,
            grid=(nb, nvk),                      # rows parallel, vocab reduce
            in_specs=[
                pl.BlockSpec((tm, tvk), lambda i, k: (i, k)),
                pl.BlockSpec((tm, 1), lambda i, k: (i, 0)),
                pl.BlockSpec((tm, 1), lambda i, k: (i, 0)),
            ],
            out_specs=pl.BlockSpec((1, 8, 128), lambda i, k: (i, 0, 0)),
            scratch_shapes=[
                pltpu.VMEM((tm, 1), jnp.float32),   # running row max
                pltpu.VMEM((tm, 1), jnp.float32),   # running sum(exp)
                pltpu.VMEM((tm, 1), jnp.float32),   # target logit
            ],
        ),
        compiler_params=pltpu.CompilerParams(
            dimension_semantics=("parallel", "arbitrary"),
            vmem_limit_bytes=vmem_limit,
        ),
        cost_estimate=cost,
    )(logits, tgt, msk)

    total_loss = jnp.sum(parts[:, 0, 0])
    total_cnt = jnp.sum(parts[:, 0, 1])
    return total_loss / total_cnt                # NaN if mask empty (= torch)


def _reference(outputs, targets, mask):
    vocab = outputs.shape[-1]
    logits = outputs.reshape(-1, vocab).astype(jnp.float32)
    tgt = targets.reshape(-1).astype(jnp.int32)
    m = mask.reshape(-1).astype(jnp.float32)
    lse = jax.scipy.special.logsumexp(logits, axis=-1)
    tgt_logit = jnp.take_along_axis(logits, tgt[:, None], axis=-1)[:, 0]
    per_row = lse - tgt_logit
    return jnp.sum(per_row * m) / jnp.sum(m)


if __name__ == "__main__":
    # Test 1: small even shapes (batch=2, seq=8, vocab=128), f32 logits.
    B, T, V = 2, 8, 128
    key = jax.random.PRNGKey(0)
    k1, k2, k3 = jax.random.split(key, 3)
    outputs = jax.random.normal(k1, (B, T, V), dtype=jnp.float32)
    targets = jax.random.randint(k2, (B, T), 0, V, dtype=jnp.int32)
    mask = jax.random.bernoulli(k3, 0.7, (B, T))
    mask = mask.at[0, 0].set(True)               # at least one selected row

    loss = jax.block_until_ready(masked_cross_entropy(outputs, targets, mask))
    ref = jax.block_until_ready(_reference(outputs, targets, mask))
    assert jnp.allclose(loss, ref, atol=1e-5, rtol=1e-5), (loss, ref)

    # Test 2: ragged row tile (n=22 not divisible by tm) AND ragged vocab
    # chunk (V=2304 > 2048, not a multiple of the chunk), bf16 logits.
    B2, T2, V2 = 2, 11, 2304
    k4, k5, k6 = jax.random.split(jax.random.PRNGKey(1), 3)
    outputs2 = jax.random.normal(k4, (B2, T2, V2), dtype=jnp.bfloat16)
    targets2 = jax.random.randint(k5, (B2, T2), 0, V2, dtype=jnp.int32)
    mask2 = jax.random.bernoulli(k6, 0.6, (B2, T2))
    mask2 = mask2.at[0, 0].set(True)

    loss2 = jax.block_until_ready(
        masked_cross_entropy(outputs2, targets2, mask2))
    ref2 = jax.block_until_ready(_reference(outputs2, targets2, mask2))
    assert jnp.allclose(loss2, ref2, atol=1e-3, rtol=1e-3), (loss2, ref2)

    print("KERNEL_OK")
</pallas_src>

<mosaic_0001>
module attributes {stable_mosaic.version = 11 : i64} {
  func.func @_ce_kernel(%arg0: i32, %arg1: i32, %arg2: memref<8x128xf32, #tpu.memory_space<vmem>>, %arg3: memref<8x1xi32, #tpu.memory_space<vmem>>, %arg4: memref<8x1xi32, #tpu.memory_space<vmem>>, %arg5: memref<1x8x128xf32, #tpu.memory_space<vmem>>, %arg6: memref<8x1xf32, #tpu.memory_space<vmem>>, %arg7: memref<8x1xf32, #tpu.memory_space<vmem>>, %arg8: memref<8x1xf32, #tpu.memory_space<vmem>>) attributes {dimension_semantics = [#tpu.dimension_semantics<parallel>, #tpu.dimension_semantics<arbitrary>], iteration_bounds = array<i64: 2, 1>, scalar_prefetch = 0 : i64, scratch_operands = 3 : i64, tpu.core_type = #tpu.core_type<tc>, window_params = [{transform_indices = @transform_0, window_bounds = array<i64: 8, 128>}, {transform_indices = @transform_1, window_bounds = array<i64: 8, 1>}, {transform_indices = @transform_2, window_bounds = array<i64: 8, 1>}, {transform_indices = @transform_3, window_bounds = array<i64: 1, 8, 128>}]} {
    %c0_i32 = arith.constant 0 : i32
    %0 = arith.cmpi eq, %arg1, %c0_i32 : i32
    %1 = arith.extui %0 : i1 to i32
    %c0_i32_0 = arith.constant 0 : i32
    %2 = arith.cmpi ne, %1, %c0_i32_0 : i32
    scf.if %2 {
      %cst_24 = arith.constant 0xFF800000 : f32
      %48 = vector.broadcast %cst_24 : f32 to vector<8x1xf32>
      %c0_25 = arith.constant 0 : index
      %c0_26 = arith.constant 0 : index
      %49 = vector.load %arg6[%c0_25, %c0_26] : memref<8x1xf32, #tpu.memory_space<vmem>>, vector<8x1xf32>
      tpu.vector_store %arg6[%c0_25, %c0_26], %48 {strides = array<i32>} : memref<8x1xf32, #tpu.memory_space<vmem>>, vector<8x1xf32>,
      %cst_27 = arith.constant 0.000000e+00 : f32
      %50 = vector.broadcast %cst_27 : f32 to vector<8x1xf32>
      %c0_28 = arith.constant 0 : index
      %c0_29 = arith.constant 0 : index
      %51 = vector.load %arg7[%c0_28, %c0_29] : memref<8x1xf32, #tpu.memory_space<vmem>>, vector<8x1xf32>
      tpu.vector_store %arg7[%c0_28, %c0_29], %50 {strides = array<i32>} : memref<8x1xf32, #tpu.memory_space<vmem>>, vector<8x1xf32>,
      %cst_30 = arith.constant 0.000000e+00 : f32
      %52 = vector.broadcast %cst_30 : f32 to vector<8x1xf32>
      %c0_31 = arith.constant 0 : index
      %c0_32 = arith.constant 0 : index
      %53 = vector.load %arg8[%c0_31, %c0_32] : memref<8x1xf32, #tpu.memory_space<vmem>>, vector<8x1xf32>
      tpu.vector_store %arg8[%c0_31, %c0_32], %52 {strides = array<i32>} : memref<8x1xf32, #tpu.memory_space<vmem>>, vector<8x1xf32>,
    } else {
    }
    %c0 = arith.constant 0 : index
    %c0_1 = arith.constant 0 : index
    %3 = vector.load %arg2[%c0, %c0_1] : memref<8x128xf32, #tpu.memory_space<vmem>>, vector<8x128xf32>
    %c0_2 = arith.constant 0 : index
    %c0_3 = arith.constant 0 : index
    %4 = vector.load %arg3[%c0_2, %c0_3] : memref<8x1xi32, #tpu.memory_space<vmem>>, vector<8x1xi32>
    %c128_i32 = arith.constant 128 : i32
    %5 = arith.muli %arg1, %c128_i32 : i32
    %6 = tpu.iota {dimensions = array<i32: 1>} : vector<1x128xi32>
    %7 = vector.broadcast %5 : i32 to vector<1x128xi32>
    %8 = arith.addi %7, %6 : vector<1x128xi32>
    %c128_i32_4 = arith.constant 128 : i32
    %9 = vector.broadcast %c128_i32_4 : i32 to vector<1x128xi32>
    %10 = arith.cmpi slt, %8, %9 : vector<1x128xi32>
    %cst = arith.constant 0xFF800000 : f32
    %11 = vector.shape_cast %10 : vector<1x128xi1> to vector<1x128xi1>
    %12 = vector.broadcast %11 : vector<1x128xi1> to vector<8x128xi1>
    %13 = vector.broadcast %cst : f32 to vector<8x128xf32>
    %14 = arith.select %12, %3, %13 : vector<8x128xi1>, vector<8x128xf32>
    %cst_5 = arith.constant dense<0xFF800000> : vector<8xf32>
    %15 = vector.multi_reduction <maximumf>, %14, %cst_5 [1] : vector<8x128xf32> to vector<8xf32>
    %16 = vector.shape_cast %15 : vector<8xf32> to vector<8x1xf32>
    %c0_6 = arith.constant 0 : index
    %c0_7 = arith.constant 0 : index
    %17 = vector.load %arg6[%c0_6, %c0_7] : memref<8x1xf32, #tpu.memory_space<vmem>>, vector<8x1xf32>
    %18 = arith.maximumf %17, %16 : vector<8x1xf32>
    %19 = vector.broadcast %18 : vector<8x1xf32> to vector<8x128xf32>
    %20 = arith.subf %3, %19 : vector<8x128xf32>
    %21 = math.exp %20 : vector<8x128xf32>
    %cst_8 = arith.constant 0.000000e+00 : f32
    %22 = vector.shape_cast %10 : vector<1x128xi1> to vector<1x128xi1>
    %23 = vector.broadcast %22 : vector<1x128xi1> to vector<8x128xi1>
    %24 = vector.broadcast %cst_8 : f32 to vector<8x128xf32>
    %25 = arith.select %23, %21, %24 : vector<8x128xi1>, vector<8x128xf32>
    %c0_9 = arith.constant 0 : index
    %c0_10 = arith.constant 0 : index
    %26 = vector.load %arg7[%c0_9, %c0_10] : memref<8x1xf32, #tpu.memory_space<vmem>>, vector<8x1xf32>
    %27 = arith.subf %17, %18 : vector<8x1xf32>
    %28 = math.exp %27 : vector<8x1xf32>
    %29 = arith.mulf %26, %28 : vector<8x1xf32>
    %cst_11 = arith.constant dense<0.000000e+00> : vector<8xf32>
    %30 = vector.multi_reduction <add>, %25, %cst_11 [1] : vector<8x128xf32> to vector<8xf32>
    %31 = vector.shape_cast %30 : vector<8xf32> to vector<8x1xf32>
    %32 = arith.addf %29, %31 : vector<8x1xf32>
    %c0_12 = arith.constant 0 : index
    %c0_13 = arith.constant 0 : index
    %33 = vector.load %arg7[%c0_12, %c0_13] : memref<8x1xf32, #tpu.memory_space<vmem>>, vector<8x1xf32>
    tpu.vector_store %arg7[%c0_12, %c0_13], %32 {strides = array<i32>} : memref<8x1xf32, #tpu.memory_space<vmem>>, vector<8x1xf32>,
    %c0_14 = arith.constant 0 : index
    %c0_15 = arith.constant 0 : index
    %34 = vector.load %arg6[%c0_14, %c0_15] : memref<8x1xf32, #tpu.memory_space<vmem>>, vector<8x1xf32>
    tpu.vector_store %arg6[%c0_14, %c0_15], %18 {strides = array<i32>} : memref<8x1xf32, #tpu.memory_space<vmem>>, vector<8x1xf32>,
    %35 = vector.broadcast %8 : vector<1x128xi32> to vector<8x128xi32>
    %36 = vector.broadcast %4 : vector<8x1xi32> to vector<8x128xi32>
    %37 = arith.cmpi eq, %35, %36 : vector<8x128xi32>
    %c0_16 = arith.constant 0 : index
    %c0_17 = arith.constant 0 : index
    %38 = vector.load %arg8[%c0_16, %c0_17] : memref<8x1xf32, #tpu.memory_space<vmem>>, vector<8x1xf32>
    %cst_18 = arith.constant 0.000000e+00 : f32
    %39 = vector.broadcast %cst_18 : f32 to vector<8x128xf32>
    %40 = arith.select %37, %3, %39 : vector<8x128xi1>, vector<8x128xf32>
    %cst_19 = arith.constant dense<0.000000e+00> : vector<8xf32>
    %41 = vector.multi_reduction <add>, %40, %cst_19 [1] : vector<8x128xf32> to vector<8xf32>
    %42 = vector.shape_cast %41 : vector<8xf32> to vector<8x1xf32>
    %43 = arith.addf %38, %42 : vector<8x1xf32>
    %c0_20 = arith.constant 0 : index
    %c0_21 = arith.constant 0 : index
    %44 = vector.load %arg8[%c0_20, %c0_21] : memref<8x1xf32, #tpu.memory_space<vmem>>, vector<8x1xf32>
    tpu.vector_store %arg8[%c0_20, %c0_21], %43 {strides = array<i32>} : memref<8x1xf32, #tpu.memory_space<vmem>>, vector<8x1xf32>,
    %c0_i32_22 = arith.constant 0 : i32
    %45 = arith.cmpi eq, %arg1, %c0_i32_22 : i32
    %46 = arith.extui %45 : i1 to i32
    %c0_i32_23 = arith.constant 0 : i32
    %47 = arith.cmpi ne, %46, %c0_i32_23 : i32
    scf.if %47 {
      %c0_24 = arith.constant 0 : index
      %c0_25 = arith.constant 0 : index
      %48 = vector.load %arg6[%c0_24, %c0_25] : memref<8x1xf32, #tpu.memory_space<vmem>>, vector<8x1xf32>
      %c0_26 = arith.constant 0 : index
      %c0_27 = arith.constant 0 : index
      %49 = vector.load %arg7[%c0_26, %c0_27] : memref<8x1xf32, #tpu.memory_space<vmem>>, vector<8x1xf32>
      %50 = math.log %49 : vector<8x1xf32>
      %51 = arith.addf %48, %50 : vector<8x1xf32>
      %c8_i32 = arith.constant 8 : i32
      %52 = arith.muli %arg0, %c8_i32 : i32
      %53 = tpu.iota {dimensions = array<i32: 0>} : vector<8x1xi32>
      %54 = vector.broadcast %52 : i32 to vector<8x1xi32>
      %55 = arith.addi %54, %53 : vector<8x1xi32>
      %c16_i32 = arith.constant 16 : i32
      %56 = vector.broadcast %c16_i32 : i32 to vector<8x1xi32>
      %57 = arith.cmpi slt, %55, %56 : vector<8x1xi32>
      %c0_28 = arith.constant 0 : index
      %c0_29 = arith.constant 0 : index
      %58 = vector.load %arg4[%c0_28, %c0_29] : memref<8x1xi32, #tpu.memory_space<vmem>>, vector<8x1xi32>
      %c0_i32_30 = arith.constant 0 : i32
      %59 = vector.broadcast %c0_i32_30 : i32 to vector<8x1xi32>
      %60 = arith.cmpi ne, %58, %59 : vector<8x1xi32>
      %61 = arith.andi %57, %60 : vector<8x1xi1>
      %c0_31 = arith.constant 0 : index
      %c0_32 = arith.constant 0 : index
      %62 = vector.load %arg8[%c0_31, %c0_32] : memref<8x1xf32, #tpu.memory_space<vmem>>, vector<8x1xf32>
      %63 = arith.subf %51, %62 : vector<8x1xf32>
      %cst_33 = arith.constant 0.000000e+00 : f32
      %64 = vector.broadcast %cst_33 : f32 to vector<8x1xf32>
      %65 = arith.select %61, %63, %64 : vector<8x1xi1>, vector<8x1xf32>
      %66 = vector.shape_cast %65 : vector<8x1xf32> to vector<1x8x1xf32>
      %cst_34 = arith.constant dense<0.000000e+00> : vector<1xf32>
      %67 = vector.multi_reduction <add>, %66, %cst_34 [1, 2] : vector<1x8x1xf32> to vector<1xf32>
      %68 = vector.shape_cast %67 : vector<1xf32> to vector<1x1x1xf32>
      %69 = vector.extract %68[0, 0, 0] : f32 from vector<1x1x1xf32>
      %70 = arith.extui %61 : vector<8x1xi1> to vector<8x1xi32>
      %71 = arith.sitofp %70 : vector<8x1xi32> to vector<8x1xf32>
      %72 = vector.shape_cast %71 : vector<8x1xf32> to vector<1x8x1xf32>
      %cst_35 = arith.constant dense<0.000000e+00> : vector<1xf32>
      %73 = vector.multi_reduction <add>, %72, %cst_35 [1, 2] : vector<1x8x1xf32> to vector<1xf32>
      %74 = vector.shape_cast %73 : vector<1xf32> to vector<1x1x1xf32>
      %75 = vector.extract %74[0, 0, 0] : f32 from vector<1x1x1xf32>
      %76 = tpu.iota {dimensions = array<i32: 2>} : vector<1x1x128xi32>
      %c0_i32_36 = arith.constant 0 : i32
      %77 = vector.broadcast %c0_i32_36 : i32 to vector<1x1x128xi32>
      %78 = arith.cmpi eq, %76, %77 : vector<1x1x128xi32>
      %79 = vector.broadcast %69 : f32 to vector<1x1x128xf32>
      %80 = vector.broadcast %75 : f32 to vector<1x1x128xf32>
      %81 = arith.select %78, %79, %80 : vector<1x1x128xi1>, vector<1x1x128xf32>
      %82 = vector.shape_cast %81 : vector<1x1x128xf32> to vector<1x1x128xf32>
      %83 = vector.broadcast %82 : vector<1x1x128xf32> to vector<1x8x128xf32>
      %c0_37 = arith.constant 0 : index
      %c0_38 = arith.constant 0 : index
      %c0_39 = arith.constant 0 : index
      %84 = vector.load %arg5[%c0_37, %c0_38, %c0_39] : memref<1x8x128xf32, #tpu.memory_space<vmem>>, vector<1x8x128xf32>
      tpu.vector_store %arg5[%c0_37, %c0_38, %c0_39], %83 {strides = array<i32>} : memref<1x8x128xf32, #tpu.memory_space<vmem>>, vector<1x8x128xf32>,
    } else {
    }
    return
  }
  func.func @transform_0(%arg0: i32, %arg1: i32) -> (i32, i32) {
    %c0_i32 = arith.constant 0 : i32
    return %arg0, %arg1 : i32, i32
  }
  func.func @transform_1(%arg0: i32, %arg1: i32) -> (i32, i32) {
    %c0_i32 = arith.constant 0 : i32
    %c0_i32_0 = arith.constant 0 : i32
    return %arg0, %c0_i32 : i32, i32
  }
  func.func @transform_2(%arg0: i32, %arg1: i32) -> (i32, i32) {
    %c0_i32 = arith.constant 0 : i32
    %c0_i32_0 = arith.constant 0 : i32
    return %arg0, %c0_i32 : i32, i32
  }
  func.func @transform_3(%arg0: i32, %arg1: i32) -> (i32, i32, i32) {
    %c0_i32 = arith.constant 0 : i32
    %c0_i32_0 = arith.constant 0 : i32
    %c0_i32_1 = arith.constant 0 : i32
    return %arg0, %c0_i32, %c0_i32_0 : i32, i32, i32
  }
}

</mosaic_0001>

<llo_original>
// kernel: tpu_custom_call.1
$region0: #{tpu_custom_call.1}
  #allocation0 [shape = 'u32[]', space=smem, size = 0x4, offset = 0x4, fixed_abs, tag = 'smem constant byte address 0x4 - core index']
  #allocation1 [shape = 'u32[72,128]{1,0:T(1,128)}', space=vmem, size = 0x9000, scoped, tag = 'internal scratch']
  #allocation2 [shape = 'f32[8,1]{1,0:T(8,128)}', space=vmem, size = 0x1000, scoped, tag = 'scratch operand']
  #allocation3 [shape = 'f32[8,1]{1,0:T(8,128)}', space=vmem, size = 0x1000, scoped, tag = 'scratch operand']
  #allocation4 [shape = 'f32[8,1]{1,0:T(8,128)}', space=vmem, size = 0x1000, scoped, tag = 'scratch operand']
  %s0 = inlined_call_operand.vmem [shape: f32[16,128], index: 0, kind: input, shape index: {}]
  %s1 = inlined_call_operand.vmem [shape: s32[16,1], index: 1, kind: input, shape index: {}]
  %s2 = inlined_call_operand.vmem [shape: s32[16,1], index: 2, kind: input, shape index: {}]
  %s3 = inlined_call_operand.hbm [shape: f32[2,8,128], index: 3, kind: output, shape index: {}]
  %s4 = sld [smem:[#allocation0]]
  $region53: #{tpu_custom_call.1} parent=0
    _
  %s6 = ssub.s32 1, %s4
  %s7 = scalar_select 0, %s6, %s4
  $region1: #{tpu_custom_call.1} parent=0
    #allocation5 [shape = 'u8[8192]{0}', space=vmem, size = 0x2000, scoped, tag = 'output window, operand 0']
    #allocation6 [shape = 's32[2]{0}', space=sflag, size = 0x8, scoped, tag = 'scoped memory for tpu_custom_call.1']
    %8 = vsyncpa [#allocation6], 0
    %s9 = scalar_lea.sflag [#allocation6], 1
    %10 = vsyncpa %s9, 0
    loop: start=0, step=1, limit=4
    $region2: #{tpu_custom_call.1} parent=1 // loop_pre_header
      _
    $region3: #{tpu_custom_call.1} parent=1 // loop_header
      %s12 = sphi 0, %s16
      %p13 = scmp.ge.s32.totalorder %s12, 4
      %s19 = sphi 0, %s31
      %s20 = sphi 0, %s27
      %s21 = sphi 0, %s19
      %s22 = sphi 0, %s20
      %s23 = sphi 0, %s21
      %s24 = sphi 0, %s22
      %s36 = sphi 0, %s38
      %s39 = sphi 0, %s36
      %s40 = sphi 0, %s39
      %s56 = sphi 0, %s40
      %s62 = sphi 0, %s64
      %s65 = sphi 0, %s62
      %s66 = sphi 0, %s65
      %s82 = sphi 0, %s66
      %s88 = sphi 0, %s90
      %s91 = sphi 0, %s88
      %s92 = sphi 0, %s91
      %s108 = sphi 0, %s92
      %s114 = sphi 0, %s116
      %s117 = sphi 0, %s114
      %s118 = sphi 0, %s117
      %s134 = sphi 0, %s118
    $region4: #{tpu_custom_call.1} parent=1 // loop_header_branch
      %15 = sbr.rel (%p13) target = $region8
    $region5: #{tpu_custom_call.1} parent=1 // loop_body
      %s17 = ssub.s32 %s12, 1
      %s18 = ssub.s32 %s12, 2
      %s25 = sadd.s32 1, %s20
      %p26 = scmp.ge.s32.totalorder %s25, 1
      %s27 = scalar_select %p26, 0, %s25
      %s28 = sadd.s32 1, %s19
      %s29 = scalar_select %p26, %s28, %s19
      %p30 = scmp.ge.s32.totalorder %s29, 2
      %s31 = scalar_select %p30, 0, %s29
      %s32 = ssub.s32 %s19, %s31
      %s33 = ssub.s32 %s20, %s27
      %s34 = sor.u32 %s32, %s33
      %p35 = scmp.eq.s32.totalorder %s34, 0
      %s37 = sadd.s32 %s36, 1
      %s38 = scalar_select %p35, %s36, %s37
      %p41 = pneg %p35
      %p42 = scmp.eq.s32.totalorder %s12, 1
      %p43 = por %p41, %p42
      %p44 = scmp.ne.s32.totalorder %s36, %s39
      %p45 = scmp.eq.s32.totalorder %s12, 0
      %p46 = por %p44, %p45
      %p47 = scmp.ne.s32.totalorder %s36, %s39
      %p48 = scmp.eq.s32.totalorder %s17, 1
      %p49 = por %p47, %p48
      %p50 = scmp.ne.s32.totalorder %s39, %s40
      %p51 = scmp.eq.s32.totalorder %s17, 0
      %p52 = por %p50, %p51
      %p53 = scmp.ne.s32.totalorder %s39, %s40
      %p54 = scmp.eq.s32.totalorder %s18, 1
      %p55 = por %p53, %p54
      %p57 = scmp.ne.s32.totalorder %s40, %s56
      %p58 = scmp.eq.s32.totalorder %s18, 0
      %p59 = por %p57, %p58
      %s60 = ssub.s32 %s19, %s31
      %p61 = scmp.eq.s32.totalorder %s60, 0
      %s63 = sadd.s32 %s62, 1
      %s64 = scalar_select %p61, %s62, %s63
      %p67 = pneg %p61
      %p68 = scmp.eq.s32.totalorder %s12, 1
      %p69 = por %p67, %p68
      %p70 = scmp.ne.s32.totalorder %s62, %s65
      %p71 = scmp.eq.s32.totalorder %s12, 0
      %p72 = por %p70, %p71
      %p73 = scmp.ne.s32.totalorder %s62, %s65
      %p74 = scmp.eq.s32.totalorder %s17, 1
      %p75 = por %p73, %p74
      %p76 = scmp.ne.s32.totalorder %s65, %s66
      %p77 = scmp.eq.s32.totalorder %s17, 0
      %p78 = por %p76, %p77
      %p79 = scmp.ne.s32.totalorder %s65, %s66
      %p80 = scmp.eq.s32.totalorder %s18, 1
      %p81 = por %p79, %p80
      %p83 = scmp.ne.s32.totalorder %s66, %s82
      %p84 = scmp.eq.s32.totalorder %s18, 0
      %p85 = por %p83, %p84
      %s86 = ssub.s32 %s19, %s31
      %p87 = scmp.eq.s32.totalorder %s86, 0
      %s89 = sadd.s32 %s88, 1
      %s90 = scalar_select %p87, %s88, %s89
      %p93 = pneg %p87
      %p94 = scmp.eq.s32.totalorder %s12, 1
      %p95 = por %p93, %p94
      %p96 = scmp.ne.s32.totalorder %s88, %s91
      %p97 = scmp.eq.s32.totalorder %s12, 0
      %p98 = por %p96, %p97
      %p99 = scmp.ne.s32.totalorder %s88, %s91
      %p100 = scmp.eq.s32.totalorder %s17, 1
      %p101 = por %p99, %p100
      %p102 = scmp.ne.s32.totalorder %s91, %s92
      %p103 = scmp.eq.s32.totalorder %s17, 0
      %p104 = por %p102, %p103
      %p105 = scmp.ne.s32.totalorder %s91, %s92
      %p106 = scmp.eq.s32.totalorder %s18, 1
      %p107 = por %p105, %p106
      %p109 = scmp.ne.s32.totalorder %s92, %s108
      %p110 = scmp.eq.s32.totalorder %s18, 0
      %p111 = por %p109, %p110
      %s112 = ssub.s32 %s19, %s31
      %p113 = scmp.eq.s32.totalorder %s112, 0
      %s115 = sadd.s32 %s114, 1
      %s116 = scalar_select %p113, %s114, %s115
      %p119 = pneg %p113
      %p120 = scmp.eq.s32.totalorder %s12, 1
      %p121 = por %p119, %p120
      %p122 = scmp.ne.s32.totalorder %s114, %s117
      %p123 = scmp.eq.s32.totalorder %s12, 0
      %p124 = por %p122, %p123
      %p125 = scmp.ne.s32.totalorder %s114, %s117
      %p126 = scmp.eq.s32.totalorder %s17, 1
      %p127 = por %p125, %p126
      %p128 = scmp.ne.s32.totalorder %s117, %s118
      %p129 = scmp.eq.s32.totalorder %s17, 0
      %p130 = por %p128, %p129
      %p131 = scmp.ne.s32.totalorder %s117, %s118
      %p132 = scmp.eq.s32.totalorder %s18, 1
      %p133 = por %p131, %p132
      %p135 = scmp.ne.s32.totalorder %s118, %s134
      %p136 = scmp.eq.s32.totalorder %s18, 0
      %p137 = por %p135, %p136
      %p138 = scmp.le.s32.totalorder 1, %s12
      %p139 = scmp.lt.s32.totalorder %s12, 3
      %p140 = pnand %p138, %p139
      %p141 = pneg %p140
      // Predicated region
      $region9: #{tpu_custom_call.1} parent=5 // pred_check
        _
      $region10: #{tpu_custom_call.1} parent=5 // pred_check_branch
        %143 = sbr.rel (%p140) target = $region12
      $region11: #{tpu_custom_call.1} parent=5 // pred_region
        %s144 = ssub.s32 %s12, 1
      $region12: #{tpu_custom_call.1} parent=5 // pred_fallthru
        _
      %p145 = scmp.lt.s32.totalorder %s12, 2
      // Predicated region
      $region13: #{tpu_custom_call.1} parent=5 // pred_check
        %p146 = pneg %p145
      $region14: #{tpu_custom_call.1} parent=5 // pred_check_branch
        %148 = sbr.rel (%p146) target = $region16
      $region15: #{tpu_custom_call.1} parent=5 // pred_region
        // Predicated region
        $region17: #{tpu_custom_call.1} parent=15 // pred_check
          %p149 = pneg %p46
        $region18: #{tpu_custom_call.1} parent=15 // pred_check_branch
          %151 = sbr.rel (%p149) target = $region20
        $region19: #{tpu_custom_call.1} parent=15 // pred_region
          %p152 = scmp.lt.s32.totalorder %s19, 1
          %s153 = scalar_select %p152, %s19, 1
          %p154 = scmp.lt.s32.totalorder %s20, 0
          %s155 = scalar_select %p154, %s20, 0
          %s156 = sadd.s32 %s155, %s153
          %s157 = smul.addr %s156, 8
          %s158 = scalar_lea.vmem %s0, %s157
        $region20: #{tpu_custom_call.1} parent=15 // pred_fallthru
          _
        // Predicated region
        $region21: #{tpu_custom_call.1} parent=15 // pred_check
          %p159 = pneg %p72
        $region22: #{tpu_custom_call.1} parent=15 // pred_check_branch
          %161 = sbr.rel (%p159) target = $region24
        $region23: #{tpu_custom_call.1} parent=15 // pred_region
          %p162 = scmp.lt.s32.totalorder %s19, 1
          %s163 = scalar_select %p162, %s19, 1
          %s164 = smul.addr %s163, 8
          %s165 = scalar_lea.vmem %s1, %s164
        $region24: #{tpu_custom_call.1} parent=15 // pred_fallthru
          _
        // Predicated region
        $region25: #{tpu_custom_call.1} parent=15 // pred_check
          %p166 = pneg %p98
        $region26: #{tpu_custom_call.1} parent=15 // pred_check_branch
          %168 = sbr.rel (%p166) target = $region28
        $region27: #{tpu_custom_call.1} parent=15 // pred_region
          %p169 = scmp.lt.s32.totalorder %s19, 1
          %s170 = scalar_select %p169, %s19, 1
          %s171 = smul.addr %s170, 8
          %s172 = scalar_lea.vmem %s2, %s171
        $region28: #{tpu_custom_call.1} parent=15 // pred_fallthru
          _
      $region16: #{tpu_custom_call.1} parent=5 // pred_fallthru
        _
      %p173 = scmp.le.s32.totalorder 1, %s12
      %p174 = scmp.lt.s32.totalorder %s12, 3
      %p175 = pnand %p173, %p174
      %p176 = pneg %p175
      // Predicated region
      $region29: #{tpu_custom_call.1} parent=5 // pred_check
        _
      $region30: #{tpu_custom_call.1} parent=5 // pred_check_branch
        %178 = sbr.rel (%p175) target = $region32
      $region31: #{tpu_custom_call.1} parent=5 // pred_region
        %s179 = ssub.s32 %s12, 1
        %p180 = scmp.lt.s32.totalorder %s21, 1
        %s181 = scalar_select %p180, %s21, 1
        %p182 = scmp.lt.s32.totalorder %s22, 0
        %s183 = scalar_select %p182, %s22, 0
        %s184 = sadd.s32 %s183, %s181
        %s185 = smul.addr %s184, 8
        %s186 = scalar_lea.vmem %s0, %s185
        %p187 = pneg %p52
        %p188 = pneg %p49
        %p189 = scmp.lt.s32.totalorder %s21, 1
        %s190 = scalar_select %p189, %s21, 1
        %s191 = smul.addr %s190, 8
        %s192 = scalar_lea.vmem %s1, %s191
        %p193 = pneg %p78
        %p194 = pneg %p75
        %p195 = scmp.lt.s32.totalorder %s21, 1
        %s196 = scalar_select %p195, %s21, 1
        %s197 = smul.addr %s196, 8
        %s198 = scalar_lea.vmem %s2, %s197
        %p199 = pneg %p104
        %p200 = pneg %p101
        %p201 = pneg %p130
        %p202 = pneg %p127
        %s203 = sand.u32 %s117, 1
        %s204 = scalar_lea.sflag [#allocation6], %s203
        %s205 = sand.u32 %s117, 1
        %s206 = smul.addr %s205, 8
        %s207 = scalar_lea.vmem [#allocation5], %s206
        %p208 = scmp.lt.s32.totalorder %s21, 1
        %s209 = scalar_select %p208, %s21, 1
        %p210 = scmp.lt.s32.totalorder %s22, 0
        %s211 = scalar_select %p210, %s22, 0
        %s212 = sadd.s32 %s211, %s209
        %s213 = smul.addr %s212, 8
        %s214 = scalar_lea.vmem %s0, %s213
        %p215 = scmp.lt.s32.totalorder %s21, 1
        %s216 = scalar_select %p215, %s21, 1
        %s217 = smul.addr %s216, 8
        %s218 = scalar_lea.vmem %s1, %s217
        %p219 = scmp.lt.s32.totalorder %s21, 1
        %s220 = scalar_select %p219, %s21, 1
        %s221 = smul.addr %s220, 8
        %s222 = scalar_lea.vmem %s2, %s221
        %p223 = scmp.eq.s32.totalorder %s22, 0
        // Predicated region
        $region33: #{tpu_custom_call.1} parent=31 // pred_check
          %p224 = pneg %p223
        $region34: #{tpu_custom_call.1} parent=31 // pred_check_branch
          %226 = sbr.rel (%p224) target = $region36
        $region35: #{tpu_custom_call.1} parent=31 // pred_region
          %vm227 = vcmask 7168
          %228 = vst.msk [vmem:[#allocation2] sm:$0xff] %vm227, -inf
          %229 = vst.msk [vmem:[#allocation3] sm:$0xff] %vm227, 0.0
          %230 = vst.msk [vmem:[#allocation4] sm:$0xff] %vm227, 0.0
        $region36: #{tpu_custom_call.1} parent=31 // pred_fallthru
          _
        %v231 = vld [vmem:[%s214] sm:$0xff]
        %v232 = vld [vmem:[%s218] sm:$0xff]
        %s233 = smul.u32 %s22, 128
        %v234 = vlaneseq
        %v235 = vand.u32 %v234, 127
        %v236 = vstv %s233
        %v237 = vadd.s32 %v236, %v235
        %vm238 = vcmp.lt.s32.totalorder %v237, 128
        %v239 = vsel %vm238, 1, 0
        %vm240 = vcmp.eq.s32.totalorder %v239, 1
        %v241 = vsel %vm240, %v231, -inf
        %242 = vmax.xlane.f32.xlu0 %v241
        %v243 = vpop.xlane.xlu0 %242
        %v244 = vld [vmem:[#allocation2] sm:$0xff]
        %v245 = vmax.f32 %v244, %v243
        %247 = vset.pattern.permute.xlu0 0
        %248 = vperm.xlu0 %247, %v245
        %v249 = vpop.permute.xlu0 %248
        %v251 = vsub.f32 %v231, %v249
        %v252 = vmul.f32 %v251, 1.442695
        %v253 = vpow.pop %v252
        %v254 = vsel %vm240, %v253, 0.0
        %v255 = vld [vmem:[#allocation3] sm:$0xff]
        %v256 = vsub.f32 %v244, %v245
        %v257 = vmul.f32 %v256, 1.442695
        %v258 = vpow.pop %v257
        %v259 = vmul.f32 %v255, %v258
        %260 = vadd.xlane.f32.xlu0 %v254
        %v261 = vpop.xlane.xlu0 %260
        %v262 = vadd.f32 %v259, %v261
        %vm263 = vcmask 7168
        %264 = vst.msk [vmem:[#allocation3] sm:$0xff] %vm263, %v262
        %265 = vst.msk [vmem:[#allocation2] sm:$0xff] %vm263, %v245
        %266 = vset.pattern.permute.xlu0 0
        %267 = vperm.xlu0 %266, %v232
        %v268 = vpop.permute.xlu0 %267
        %vm269 = vcmp.eq.s32.totalorder %v237, %v268
        %v270 = vld [vmem:[#allocation4] sm:$0xff]
        %v271 = vsel %vm269, %v231, 0.0
        %272 = vadd.xlane.f32.xlu0 %v271
        %v273 = vpop.xlane.xlu0 %272
        %v274 = vadd.f32 %v270, %v273
        %275 = vst.msk [vmem:[#allocation4] sm:$0xff] %vm263, %v274
        // Predicated region
        $region37: #{tpu_custom_call.1} parent=31 // pred_check
          %p276 = pneg %p223
        $region38: #{tpu_custom_call.1} parent=31 // pred_check_branch
          %278 = sbr.rel (%p276) target = $region40
        $region39: #{tpu_custom_call.1} parent=31 // pred_region
          %v279 = vld [vmem:[#allocation2] sm:$0xff]
          %v280 = vld [vmem:[#allocation3] sm:$0xff]
          %v281 = vlog2.pop %v280
          %v282 = vmul.f32 %v281, 0.6931472
          %v283 = vadd.f32 %v279, %v282
          %s284 = smul.u32 %s21, 8
          %v285 = vlaneseq
          %v286 = vshrl.u32 %v285, 7
          %v287 = vstv %s284
          %v288 = vadd.s32 %v287, %v286
          %vm289 = vcmp.lt.s32.totalorder %v288, 16
          %v290 = vld [vmem:[%s222] sm:$0xff]
          %vm291 = vcmp.ne.s32.totalorder %v290, 0
          %vm292 = vmand %vm289, %vm291
          %v293 = vld [vmem:[#allocation4] sm:$0xff]
          %v294 = vsub.f32 %v283, %v293
          %v295 = vsel %vm292, %v294, 0.0
          %v296 = vsel %vm263, %v295, 0.0
          %297 = vadd.xlane.f32.xlu0 %v296
          %v298 = vpop.xlane.xlu0 %297
          %v299 = vrot.slane %v298, 4
          %v300 = vadd.f32 %v298, %v299
          %v301 = vrot.slane %v300, 2
          %v302 = vadd.f32 %v300, %v301
          %v303 = vrot.slane %v302, 1
          %v304 = vadd.f32 %v302, %v303
          %s305 = vtos %v304
          %v306 = vsel %vm292, 1, 0
          %v307 = vcvt.s32.f32 %v306
          %v308 = vsel %vm263, %v307, 0.0
          %309 = vadd.xlane.f32.xlu0 %v308
          %v310 = vpop.xlane.xlu0 %309
          %v311 = vrot.slane %v310, 4
          %v312 = vadd.f32 %v310, %v311
          %v313 = vrot.slane %v312, 2
          %v314 = vadd.f32 %v312, %v313
          %v315 = vrot.slane %v314, 1
          %v316 = vadd.f32 %v314, %v315
          %s317 = vtos %v316
          %vm318 = vcmp.eq.s32.totalorder %v235, 0
          %v319 = vstv %s305
          %v320 = vstv %s317
          %v321 = vsel %vm318, %v319, %v320
          %322 = vst [vmem:[%s207] sm:$0xff] %v321
        $region40: #{tpu_custom_call.1} parent=31 // pred_fallthru
          _
        %s323 = sand.u32 %s117, 1
        %s324 = scalar_lea.sflag [#allocation6], %s323
        %s325 = sand.u32 %s117, 1
        %s326 = smul.addr %s325, 8
        %s327 = scalar_lea.vmem [#allocation5], %s326
        // Predicated region
        $region41: #{tpu_custom_call.1} parent=31 // pred_check
          %p328 = pneg %p127
        $region42: #{tpu_custom_call.1} parent=31 // pred_check_branch
          %330 = sbr.rel (%p328) target = $region44
        $region43: #{tpu_custom_call.1} parent=31 // pred_region
          %332 = vsyncadd %s324, 0
          %s333 = smul.addr %s21, 8
          %s334 = scalar_lea.hbm %s3, %s333
          %s336 = sshll.u32 %s327, 4
          %s337 = int_to_ptr.vmem [resolvable:$true] %s336
          %s338 = sshll.u32 %s334, 4
          %s339 = int_to_ptr.hbm [resolvable:$true] %s338
          %341 = dma.vmem_to_hbm [thread:$0]  %s337, 128, %s339, %s324
        $region44: #{tpu_custom_call.1} parent=31 // pred_fallthru
          _
      $region32: #{tpu_custom_call.1} parent=5 // pred_fallthru
        _
      %p342 = scmp.le.s32.totalorder 2, %s12
      // Predicated region
      $region45: #{tpu_custom_call.1} parent=5 // pred_check
        %p343 = pneg %p342
      $region46: #{tpu_custom_call.1} parent=5 // pred_check_branch
        %345 = sbr.rel (%p343) target = $region48
      $region47: #{tpu_custom_call.1} parent=5 // pred_region
        %s346 = ssub.s32 %s12, 2
        // Predicated region
        $region49: #{tpu_custom_call.1} parent=47 // pred_check
          %p347 = pneg %p133
        $region50: #{tpu_custom_call.1} parent=47 // pred_check_branch
          %349 = sbr.rel (%p347) target = $region52
        $region51: #{tpu_custom_call.1} parent=47 // pred_region
          %s350 = sand.u32 %s118, 1
          %s351 = scalar_lea.sflag [#allocation6], %s350
          %s352 = sand.u32 %s118, 1
          %s353 = smul.addr %s352, 8
          %s354 = scalar_lea.vmem [#allocation5], %s353
          %356 = dma.done %s351, 128
        $region52: #{tpu_custom_call.1} parent=47 // pred_fallthru
          _
      $region48: #{tpu_custom_call.1} parent=5 // pred_fallthru
        _
    $region6: #{tpu_custom_call.1} parent=1 // loop_footer
      %s16 = sadd.s32 1, %s12
    $region7: #{tpu_custom_call.1} parent=1 // loop_footer_branch
      %11 = sbr.rel target = $region3
    $region8: #{tpu_custom_call.1} parent=1 // loop_exit
      _
    %357 = vsyncpa [#allocation6], 1
    %s358 = scalar_lea.sflag [#allocation6], 1
    %359 = vsyncpa %s358, 1

</llo_original>
